<compile_context>
chip_gen: v7x
topology: tpu7x:2x2x1
jax: 0.10.0
libtpu: 0.0.40
codegen_flags: <defaults>
</compile_context>

<pallas_src>
import jax
import jax.numpy as jnp
from jax import lax
from jax.experimental import pallas as pl
from jax.experimental.pallas import tpu as pltpu


_INV_SQRT2 = 0.7071067811865476


def _vmem_budgets():
    """Return (pipeline-buffer budget, scoped vmem limit) bytes for the local TPU generation."""
    cap = None
    try:
        cap = int(pltpu.get_tpu_info().vmem_capacity_bytes)
    except Exception:
        cap = None
    if cap is not None and cap >= 100 * 1024 * 1024:      # v5e / v6e: 128 MiB physical VMEM
        return 48 * 1024 * 1024, 80 * 1024 * 1024
    return 20 * 1024 * 1024, 36 * 1024 * 1024             # v7x (64 MiB) or unknown: stay safe


def _erf(z):
    """erf via Abramowitz-Stegun 7.1.26 (|error| < 1.5e-7); only Mosaic-safe elementwise ops."""
    az = jnp.abs(z)
    t = 1.0 / (1.0 + 0.3275911 * az)
    poly = t * (0.254829592 + t * (-0.284496736 + t * (1.421413741
             + t * (-1.453152027 + t * 1.061405429))))
    e = 1.0 - poly * jnp.exp(-az * az)
    return jnp.where(z < 0.0, -e, e)


def _downscale_kernel(x_ref, p_ref, w_ref, o_ref):
    # x_ref : (K, TN)  bf16  X^T tile; rows = (c, kh, kw), cols = flattened (oh, ow) pixels
    # p_ref : (K, 4)   f32   per-row params [a, b, a/sqrt2, b/sqrt2] of the BN affine
    # w_ref : (OC, K)  bf16  conv weight * 0.5   (GELU's 0.5 folded in)
    # o_ref : (OC, TN) out dtype, lane-dense along TN
    x = x_ref[...].astype(jnp.float32)
    p = p_ref[...]
    a, b = p[:, 0:1], p[:, 1:2]
    a2, b2 = p[:, 2:3], p[:, 3:4]
    xn = x * a + b                      # BatchNorm (inference affine), f32
    z = x * a2 + b2                     # = xn / sqrt(2)
    g = xn + xn * _erf(z)               # = 2 * GELU(xn); the 0.5 lives in w_ref
    # MXU matmul with bf16 operands, f32 accumulation.
    o_ref[...] = jnp.dot(w_ref[...], g.astype(w_ref.dtype),
                         preferred_element_type=jnp.float32).astype(o_ref.dtype)


def _pick_tile_n(ohw, cap):
    """Column tile: whole row if it fits, else the largest 128-multiple divisor <= cap,
    else a 128-aligned tile with a masked boundary block (columns are independent)."""
    if ohw <= cap:
        return ohw
    target = max(128, (cap // 128) * 128)
    d = target
    while d >= 128:
        if ohw % d == 0:
            return d
        d -= 128
    return target


def downscale_forward(x_nchw, conv_w, gamma, beta, running_mean, running_var,
                      scale, eps=1e-5, tile_n=4096, matmul_dtype=jnp.bfloat16,
                      out_dtype=jnp.float32):
    """x_nchw: (N, C, H, W). conv_w: (OC, C, s, s). Returns (N, OC, H//s, W//s) in out_dtype."""
    N, C, H, W = x_nchw.shape
    OC = conv_w.shape[0]
    s = int(scale)
    if (H % s) or (W % s):  # PyTorch's strided conv silently drops the remainder
        x_nchw = x_nchw[:, :, : (H // s) * s, : (W // s) * s]
        N, C, H, W = x_nchw.shape
    OH, OW = H // s, W // s
    OHW = OH * OW
    K = C * s * s
    f32 = jnp.float32

    # --- tiny parameter prep (negligible HBM traffic) ---
    inv_std = gamma.astype(f32) / jnp.sqrt(running_var.astype(f32) + eps)
    a = jnp.repeat(inv_std, s * s)                                       # (K,)
    b = jnp.repeat(beta.astype(f32) - running_mean.astype(f32) * inv_std, s * s)
    p_mat = jnp.stack([a, b, a * _INV_SQRT2, b * _INV_SQRT2], axis=1)    # (K, 4) f32
    # (OC, C, s, s) -> (OC, K); columns already in (c, kh, kw) order. Fold GELU's 0.5 in.
    w_half = (0.5 * conv_w.reshape(OC, K).astype(f32)).astype(matmul_dtype)

    # --- space-to-depth into X^T: (N, K, OH*OW) in bf16; rows (c, kh, kw), cols (oh, ow) ---
    # TODO(synk): fuse this relayout into the kernel's input DMA to drop the last glue round trip.
    xt = x_nchw.astype(matmul_dtype).reshape(N, C, OH, s, OW, s)
    xt = jnp.transpose(xt, (0, 1, 3, 5, 2, 4)).reshape(N, K, OHW)

    # --- tile selection: large, lane-dense, VMEM-budgeted per TPU generation ---
    budget, limit = _vmem_budgets()
    x_isz = jnp.dtype(matmul_dtype).itemsize
    o_isz = jnp.dtype(out_dtype).itemsize
    fixed_bytes = 2 * OC * K * x_isz + 2 * K * 4 * 4          # w + p, double-buffered
    per_col = 2 * K * x_isz + 2 * OC * o_isz                  # x / out tiles, double-buffered
    per_col += 16 * K + 4 * OC                                # in-kernel f32 temporaries + acc
    cap_cols = max(128, (budget - fixed_bytes) // per_col)
    tn = _pick_tile_n(OHW, min(int(tile_n), int(cap_cols)))
    n_tiles = pl.cdiv(OHW, tn)
    # v7x shards "parallel" grid axes over 2 TensorCores: keep >= 2 grid points when possible.
    if N * n_tiles < 2 and OHW >= 256:
        tn = max(128, (OHW // 2 // 128) * 128)
        n_tiles = pl.cdiv(OHW, tn)
    grid = (N, n_tiles)

    out = pl.pallas_call(
        _downscale_kernel,
        out_shape=jax.ShapeDtypeStruct((N, OC, OHW), out_dtype),
        grid_spec=pltpu.PrefetchScalarGridSpec(
            num_scalar_prefetch=0,
            grid=grid,
            in_specs=[
                pl.BlockSpec((None, K, tn), lambda n, t: (n, 0, t)),
                pl.BlockSpec((K, 4), lambda n, t: (0, 0)),
                pl.BlockSpec((OC, K), lambda n, t: (0, 0)),
            ],
            out_specs=pl.BlockSpec((None, OC, tn), lambda n, t: (n, 0, t)),
        ),
        compiler_params=pltpu.CompilerParams(
            dimension_semantics=("parallel", "parallel"),
            vmem_limit_bytes=limit),
    )(xt, p_mat, w_half)

    # (N, OC, OH*OW) -> (N, OC, OH, OW): pure reshape, no HBM transpose.
    return out.reshape(N, OC, OH, OW)


def downscale_reference(x_nchw, conv_w, gamma, beta, running_mean, running_var,
                        scale, eps=1e-5):
    """Pure-JAX reference matching the PyTorch module (eval-mode BN, exact GELU, f32 conv)."""
    inv_std = gamma / jnp.sqrt(running_var + eps)
    xn = (x_nchw - running_mean[None, :, None, None]) * inv_std[None, :, None, None] \
         + beta[None, :, None, None]
    g = 0.5 * xn * (1.0 + lax.erf(xn * _INV_SQRT2))
    return lax.conv_general_dilated(
        g, conv_w, window_strides=(scale, scale), padding="VALID",
        dimension_numbers=("NCHW", "OIHW", "NCHW"))


if __name__ == "__main__":
    # Small deterministic example: N=2, in_c=4, H=W=16, out_c=8, scale=2.
    N, IN_C, H, W = 2, 4, 16, 16
    OUT_C, SCALE = 8, 2

    key = jax.random.PRNGKey(0)
    kx, kw = jax.random.split(key)
    x = jax.random.normal(kx, (N, IN_C, H, W), dtype=jnp.float32)
    conv_w = 0.1 * jax.random.normal(kw, (OUT_C, IN_C, SCALE, SCALE), dtype=jnp.float32)

    # Deterministic BatchNorm2d parameters / running statistics.
    gamma = jnp.linspace(0.8, 1.2, IN_C, dtype=jnp.float32)
    beta = jnp.linspace(-0.1, 0.1, IN_C, dtype=jnp.float32)
    running_mean = jnp.linspace(-0.2, 0.2, IN_C, dtype=jnp.float32)
    running_var = jnp.linspace(0.9, 1.1, IN_C, dtype=jnp.float32)

    y = downscale_forward(x, conv_w, gamma, beta, running_mean, running_var, SCALE)
    y = jax.block_until_ready(y)

    y_ref = downscale_reference(x, conv_w, gamma, beta, running_mean, running_var, SCALE)
    assert y.shape == (N, OUT_C, H // SCALE, W // SCALE), y.shape
    # bf16 activations + bf16 MXU operands (f32 accumulate) vs. the f32 reference.
    assert jnp.allclose(y, y_ref, atol=3e-2, rtol=3e-2), float(jnp.max(jnp.abs(y - y_ref)))

    print("KERNEL_OK")
</pallas_src>

<mosaic_0001>
module attributes {stable_mosaic.version = 11 : i64} {
  func.func @_downscale_kernel(%arg0: i32, %arg1: i32, %arg2: memref<1x16x64xbf16, #tpu.memory_space<vmem>>, %arg3: memref<16x4xf32, #tpu.memory_space<vmem>>, %arg4: memref<8x16xbf16, #tpu.memory_space<vmem>>, %arg5: memref<1x8x64xf32, #tpu.memory_space<vmem>>) attributes {dimension_semantics = [#tpu.dimension_semantics<parallel>, #tpu.dimension_semantics<parallel>], iteration_bounds = array<i64: 2, 1>, scalar_prefetch = 0 : i64, scratch_operands = 0 : i64, tpu.core_type = #tpu.core_type<tc>, window_params = [{transform_indices = @transform_0, window_bounds = array<i64: 1, 16, 64>}, {pipeline_mode = #tpu.pipeline_mode<synchronous>, transform_indices = @transform_1, window_bounds = array<i64: 16, 4>}, {pipeline_mode = #tpu.pipeline_mode<synchronous>, transform_indices = @transform_2, window_bounds = array<i64: 8, 16>}, {transform_indices = @transform_3, window_bounds = array<i64: 1, 8, 64>}]} {
    %c0 = arith.constant 0 : index
    %c0_0 = arith.constant 0 : index
    %c0_1 = arith.constant 0 : index
    %0 = vector.load %arg2[%c0, %c0_0, %c0_1] : memref<1x16x64xbf16, #tpu.memory_space<vmem>>, vector<1x16x64xbf16>
    %1 = vector.shape_cast %0 : vector<1x16x64xbf16> to vector<16x64xbf16>
    %2 = arith.extf %1 : vector<16x64xbf16> to vector<16x64xf32>
    %c0_2 = arith.constant 0 : index
    %c0_3 = arith.constant 0 : index
    %3 = vector.load %arg3[%c0_2, %c0_3] : memref<16x4xf32, #tpu.memory_space<vmem>>, vector<16x4xf32>
    %4 = vector.extract_strided_slice %3 {offsets = [0, 0], sizes = [16, 1], strides = [1, 1]} : vector<16x4xf32> to vector<16x1xf32>
    %5 = vector.extract_strided_slice %3 {offsets = [0, 1], sizes = [16, 1], strides = [1, 1]} : vector<16x4xf32> to vector<16x1xf32>
    %6 = vector.extract_strided_slice %3 {offsets = [0, 2], sizes = [16, 1], strides = [1, 1]} : vector<16x4xf32> to vector<16x1xf32>
    %7 = vector.extract_strided_slice %3 {offsets = [0, 3], sizes = [16, 1], strides = [1, 1]} : vector<16x4xf32> to vector<16x1xf32>
    %8 = vector.broadcast %4 : vector<16x1xf32> to vector<16x64xf32>
    %9 = arith.mulf %2, %8 : vector<16x64xf32>
    %10 = vector.broadcast %5 : vector<16x1xf32> to vector<16x64xf32>
    %11 = arith.addf %9, %10 : vector<16x64xf32>
    %12 = vector.broadcast %6 : vector<16x1xf32> to vector<16x64xf32>
    %13 = arith.mulf %2, %12 : vector<16x64xf32>
    %14 = vector.broadcast %7 : vector<16x1xf32> to vector<16x64xf32>
    %15 = arith.addf %13, %14 : vector<16x64xf32>
    %16 = math.absf %15 : vector<16x64xf32>
    %cst = arith.constant 0.327591091 : f32
    %17 = vector.broadcast %cst : f32 to vector<16x64xf32>
    %18 = arith.mulf %17, %16 : vector<16x64xf32>
    %cst_4 = arith.constant 1.000000e+00 : f32
    %19 = vector.broadcast %cst_4 : f32 to vector<16x64xf32>
    %20 = arith.addf %19, %18 : vector<16x64xf32>
    %cst_5 = arith.constant 1.000000e+00 : f32
    %21 = vector.broadcast %cst_5 : f32 to vector<16x64xf32>
    %22 = arith.divf %21, %20 : vector<16x64xf32>
    %cst_6 = arith.constant 1.06140542 : f32
    %23 = vector.broadcast %cst_6 : f32 to vector<16x64xf32>
    %24 = arith.mulf %22, %23 : vector<16x64xf32>
    %cst_7 = arith.constant -1.45315206 : f32
    %25 = vector.broadcast %cst_7 : f32 to vector<16x64xf32>
    %26 = arith.addf %25, %24 : vector<16x64xf32>
    %27 = arith.mulf %22, %26 : vector<16x64xf32>
    %cst_8 = arith.constant 1.42141378 : f32
    %28 = vector.broadcast %cst_8 : f32 to vector<16x64xf32>
    %29 = arith.addf %28, %27 : vector<16x64xf32>
    %30 = arith.mulf %22, %29 : vector<16x64xf32>
    %cst_9 = arith.constant -0.284496725 : f32
    %31 = vector.broadcast %cst_9 : f32 to vector<16x64xf32>
    %32 = arith.addf %31, %30 : vector<16x64xf32>
    %33 = arith.mulf %22, %32 : vector<16x64xf32>
    %cst_10 = arith.constant 0.254829586 : f32
    %34 = vector.broadcast %cst_10 : f32 to vector<16x64xf32>
    %35 = arith.addf %34, %33 : vector<16x64xf32>
    %36 = arith.mulf %22, %35 : vector<16x64xf32>
    %cst_11 = arith.constant 0.000000e+00 : f32
    %37 = vector.broadcast %cst_11 : f32 to vector<16x64xf32>
    %38 = arith.subf %37, %16 : vector<16x64xf32>
    %39 = arith.mulf %38, %16 : vector<16x64xf32>
    %40 = math.exp %39 : vector<16x64xf32>
    %41 = arith.mulf %36, %40 : vector<16x64xf32>
    %cst_12 = arith.constant 1.000000e+00 : f32
    %42 = vector.broadcast %cst_12 : f32 to vector<16x64xf32>
    %43 = arith.subf %42, %41 : vector<16x64xf32>
    %cst_13 = arith.constant 0.000000e+00 : f32
    %44 = vector.broadcast %cst_13 : f32 to vector<16x64xf32>
    %45 = arith.cmpf olt, %15, %44 : vector<16x64xf32>
    %cst_14 = arith.constant 0.000000e+00 : f32
    %46 = vector.broadcast %cst_14 : f32 to vector<16x64xf32>
    %47 = arith.subf %46, %43 : vector<16x64xf32>
    %48 = arith.select %45, %47, %43 : vector<16x64xi1>, vector<16x64xf32>
    %49 = arith.mulf %11, %48 : vector<16x64xf32>
    %50 = arith.addf %11, %49 : vector<16x64xf32>
    %c0_15 = arith.constant 0 : index
    %c0_16 = arith.constant 0 : index
    %51 = vector.load %arg4[%c0_15, %c0_16] : memref<8x16xbf16, #tpu.memory_space<vmem>>, vector<8x16xbf16>
    %52 = arith.truncf %50 : vector<16x64xf32> to vector<16x64xbf16>
    %cst_17 = arith.constant dense<0.000000e+00> : vector<8x64xf32>
    %53 = tpu.matmul %51, %52, %cst_17 {dimension_numbers = #tpu.dot_dimension_numbers<[1], [0], [0], [1], [0, 0, 1, 1], [], []>} : vector<8x16xbf16>, vector<16x64xbf16>, vector<8x64xf32> -> vector<8x64xf32>
    %c0_18 = arith.constant 0 : index
    %c0_19 = arith.constant 0 : index
    %c0_20 = arith.constant 0 : index
    %54 = vector.load %arg5[%c0_18, %c0_19, %c0_20] : memref<1x8x64xf32, #tpu.memory_space<vmem>>, vector<1x8x64xf32>
    %55 = vector.shape_cast %54 : vector<1x8x64xf32> to vector<8x64xf32>
    %56 = vector.shape_cast %53 : vector<8x64xf32> to vector<1x8x64xf32>
    tpu.vector_store %arg5[%c0_18, %c0_19, %c0_20], %56 {strides = array<i32>} : memref<1x8x64xf32, #tpu.memory_space<vmem>>, vector<1x8x64xf32>,
    return
  }
  func.func @transform_0(%arg0: i32, %arg1: i32) -> (i32, i32, i32) {
    %c0_i32 = arith.constant 0 : i32
    %c0_i32_0 = arith.constant 0 : i32
    return %arg0, %c0_i32, %arg1 : i32, i32, i32
  }
  func.func @transform_1(%arg0: i32, %arg1: i32) -> (i32, i32) {
    %c0_i32 = arith.constant 0 : i32
    %c0_i32_0 = arith.constant 0 : i32
    %c0_i32_1 = arith.constant 0 : i32
    return %c0_i32, %c0_i32_0 : i32, i32
  }
  func.func @transform_2(%arg0: i32, %arg1: i32) -> (i32, i32) {
    %c0_i32 = arith.constant 0 : i32
    %c0_i32_0 = arith.constant 0 : i32
    %c0_i32_1 = arith.constant 0 : i32
    return %c0_i32, %c0_i32_0 : i32, i32
  }
  func.func @transform_3(%arg0: i32, %arg1: i32) -> (i32, i32, i32) {
    %c0_i32 = arith.constant 0 : i32
    %c0_i32_0 = arith.constant 0 : i32
    return %arg0, %c0_i32, %arg1 : i32, i32, i32
  }
}

</mosaic_0001>

<llo_original>
// kernel: tpu_custom_call.1
$region0: #{tpu_custom_call.1}
  #allocation0 [shape = 'u32[]', space=smem, size = 0x4, offset = 0x4, fixed_abs, tag = 'smem constant byte address 0x4 - core index']
  #allocation1 [shape = 'u32[144,128]{1,0:T(1,128)}', space=vmem, size = 0x12000, scoped, tag = 'internal scratch']
  %s0 = inlined_call_operand.vmem [shape: bf16[2,16,64], index: 0, kind: input, shape index: {}]
  %s1 = inlined_call_operand.vmem [shape: f32[16,4], index: 1, kind: input, shape index: {}]
  %s2 = inlined_call_operand.vmem [shape: bf16[8,16], index: 2, kind: input, shape index: {}]
  %s3 = inlined_call_operand.hbm [shape: f32[2,8,64], index: 3, kind: output, shape index: {}]
  %s4 = sld [smem:[#allocation0]]
  $region45: #{tpu_custom_call.1} parent=0
    _
  %s6 = ssub.s32 1, %s4
  %s7 = scalar_select 0, %s6, %s4
  $region1: #{tpu_custom_call.1} parent=0
    #allocation2 [shape = 'u8[8192]{0}', space=vmem, size = 0x2000, scoped, tag = 'output window, operand 0']
    #allocation3 [shape = 's32[2]{0}', space=sflag, size = 0x8, scoped, tag = 'scoped memory for tpu_custom_call.1']
    %8 = vsyncpa [#allocation3], 0
    %s9 = scalar_lea.sflag [#allocation3], 1
    %10 = vsyncpa %s9, 0
    loop: start=0, step=1, limit=4
    $region2: #{tpu_custom_call.1} parent=1 // loop_pre_header
      _
    $region3: #{tpu_custom_call.1} parent=1 // loop_header
      %s12 = sphi 0, %s16
      %p13 = scmp.ge.s32.totalorder %s12, 4
      %s19 = sphi 0, %s31
      %s20 = sphi 0, %s27
      %s21 = sphi 0, %s19
      %s22 = sphi 0, %s20
      %s23 = sphi 0, %s21
      %s24 = sphi 0, %s22
      %s36 = sphi 0, %s38
      %s39 = sphi 0, %s36
      %s40 = sphi 0, %s39
      %s56 = sphi 0, %s40
      %s60 = sphi 0, %s60
      %s62 = sphi 0, %s60
      %s63 = sphi 0, %s62
      %s77 = sphi 0, %s63
      %s81 = sphi 0, %s81
      %s83 = sphi 0, %s81
      %s84 = sphi 0, %s83
      %s98 = sphi 0, %s84
      %s106 = sphi 0, %s108
      %s109 = sphi 0, %s106
      %s110 = sphi 0, %s109
      %s126 = sphi 0, %s110
    $region4: #{tpu_custom_call.1} parent=1 // loop_header_branch
      %15 = sbr.rel (%p13) target = $region8
    $region5: #{tpu_custom_call.1} parent=1 // loop_body
      %s17 = ssub.s32 %s12, 1
      %s18 = ssub.s32 %s12, 2
      %s25 = sadd.s32 1, %s20
      %p26 = scmp.ge.s32.totalorder %s25, 1
      %s27 = scalar_select %p26, 0, %s25
      %s28 = sadd.s32 1, %s19
      %s29 = scalar_select %p26, %s28, %s19
      %p30 = scmp.ge.s32.totalorder %s29, 2
      %s31 = scalar_select %p30, 0, %s29
      %s32 = ssub.s32 %s19, %s31
      %s33 = ssub.s32 %s20, %s27
      %s34 = sor.u32 %s32, %s33
      %p35 = scmp.eq.s32.totalorder %s34, 0
      %s37 = sadd.s32 %s36, 1
      %s38 = scalar_select %p35, %s36, %s37
      %p41 = pneg %p35
      %p42 = scmp.eq.s32.totalorder %s12, 1
      %p43 = por %p41, %p42
      %p44 = scmp.ne.s32.totalorder %s36, %s39
      %p45 = scmp.eq.s32.totalorder %s12, 0
      %p46 = por %p44, %p45
      %p47 = scmp.ne.s32.totalorder %s36, %s39
      %p48 = scmp.eq.s32.totalorder %s17, 1
      %p49 = por %p47, %p48
      %p50 = scmp.ne.s32.totalorder %s39, %s40
      %p51 = scmp.eq.s32.totalorder %s17, 0
      %p52 = por %p50, %p51
      %p53 = scmp.ne.s32.totalorder %s39, %s40
      %p54 = scmp.eq.s32.totalorder %s18, 1
      %p55 = por %p53, %p54
      %p57 = scmp.ne.s32.totalorder %s40, %s56
      %p58 = scmp.eq.s32.totalorder %s18, 0
      %p59 = por %p57, %p58
      %s61 = sadd.s32 %s60, 1
      %p64 = scmp.eq.s32.totalorder %s12, 1
      %p65 = scmp.ne.s32.totalorder %s60, %s62
      %p66 = scmp.eq.s32.totalorder %s12, 0
      %p67 = por %p65, %p66
      %p68 = scmp.ne.s32.totalorder %s60, %s62
      %p69 = scmp.eq.s32.totalorder %s17, 1
      %p70 = por %p68, %p69
      %p71 = scmp.ne.s32.totalorder %s62, %s63
      %p72 = scmp.eq.s32.totalorder %s17, 0
      %p73 = por %p71, %p72
      %p74 = scmp.ne.s32.totalorder %s62, %s63
      %p75 = scmp.eq.s32.totalorder %s18, 1
      %p76 = por %p74, %p75
      %p78 = scmp.ne.s32.totalorder %s63, %s77
      %p79 = scmp.eq.s32.totalorder %s18, 0
      %p80 = por %p78, %p79
      %s82 = sadd.s32 %s81, 1
      %p85 = scmp.eq.s32.totalorder %s12, 1
      %p86 = scmp.ne.s32.totalorder %s81, %s83
      %p87 = scmp.eq.s32.totalorder %s12, 0
      %p88 = por %p86, %p87
      %p89 = scmp.ne.s32.totalorder %s81, %s83
      %p90 = scmp.eq.s32.totalorder %s17, 1
      %p91 = por %p89, %p90
      %p92 = scmp.ne.s32.totalorder %s83, %s84
      %p93 = scmp.eq.s32.totalorder %s17, 0
      %p94 = por %p92, %p93
      %p95 = scmp.ne.s32.totalorder %s83, %s84
      %p96 = scmp.eq.s32.totalorder %s18, 1
      %p97 = por %p95, %p96
      %p99 = scmp.ne.s32.totalorder %s84, %s98
      %p100 = scmp.eq.s32.totalorder %s18, 0
      %p101 = por %p99, %p100
      %s102 = ssub.s32 %s19, %s31
      %s103 = ssub.s32 %s20, %s27
      %s104 = sor.u32 %s102, %s103
      %p105 = scmp.eq.s32.totalorder %s104, 0
      %s107 = sadd.s32 %s106, 1
      %s108 = scalar_select %p105, %s106, %s107
      %p111 = pneg %p105
      %p112 = scmp.eq.s32.totalorder %s12, 1
      %p113 = por %p111, %p112
      %p114 = scmp.ne.s32.totalorder %s106, %s109
      %p115 = scmp.eq.s32.totalorder %s12, 0
      %p116 = por %p114, %p115
      %p117 = scmp.ne.s32.totalorder %s106, %s109
      %p118 = scmp.eq.s32.totalorder %s17, 1
      %p119 = por %p117, %p118
      %p120 = scmp.ne.s32.totalorder %s109, %s110
      %p121 = scmp.eq.s32.totalorder %s17, 0
      %p122 = por %p120, %p121
      %p123 = scmp.ne.s32.totalorder %s109, %s110
      %p124 = scmp.eq.s32.totalorder %s18, 1
      %p125 = por %p123, %p124
      %p127 = scmp.ne.s32.totalorder %s110, %s126
      %p128 = scmp.eq.s32.totalorder %s18, 0
      %p129 = por %p127, %p128
      %p130 = scmp.le.s32.totalorder 1, %s12
      %p131 = scmp.lt.s32.totalorder %s12, 3
      %p132 = pnand %p130, %p131
      %p133 = pneg %p132
      // Predicated region
      $region9: #{tpu_custom_call.1} parent=5 // pred_check
        _
      $region10: #{tpu_custom_call.1} parent=5 // pred_check_branch
        %135 = sbr.rel (%p132) target = $region12
      $region11: #{tpu_custom_call.1} parent=5 // pred_region
        %s136 = ssub.s32 %s12, 1
        // Predicated region
        $region13: #{tpu_custom_call.1} parent=11 // pred_check
          %p137 = pneg %p73
        $region14: #{tpu_custom_call.1} parent=11 // pred_check_branch
          %139 = sbr.rel (%p137) target = $region16
        $region15: #{tpu_custom_call.1} parent=11 // pred_region
          _
        $region16: #{tpu_custom_call.1} parent=11 // pred_fallthru
          _
        // Predicated region
        $region17: #{tpu_custom_call.1} parent=11 // pred_check
          %p140 = pneg %p94
        $region18: #{tpu_custom_call.1} parent=11 // pred_check_branch
          %142 = sbr.rel (%p140) target = $region20
        $region19: #{tpu_custom_call.1} parent=11 // pred_region
          _
        $region20: #{tpu_custom_call.1} parent=11 // pred_fallthru
          _
      $region12: #{tpu_custom_call.1} parent=5 // pred_fallthru
        _
      %p143 = scmp.lt.s32.totalorder %s12, 2
      // Predicated region
      $region21: #{tpu_custom_call.1} parent=5 // pred_check
        %p144 = pneg %p143
      $region22: #{tpu_custom_call.1} parent=5 // pred_check_branch
        %146 = sbr.rel (%p144) target = $region24
      $region23: #{tpu_custom_call.1} parent=5 // pred_region
        // Predicated region
        $region25: #{tpu_custom_call.1} parent=23 // pred_check
          %p147 = pneg %p46
        $region26: #{tpu_custom_call.1} parent=23 // pred_check_branch
          %149 = sbr.rel (%p147) target = $region28
        $region27: #{tpu_custom_call.1} parent=23 // pred_region
          %p150 = scmp.lt.s32.totalorder %s19, 1
          %s151 = scalar_select %p150, %s19, 1
          %p152 = scmp.lt.s32.totalorder %s20, 0
          %s153 = scalar_select %p152, %s20, 0
          %s154 = smul.addr %s151, 2
          %s155 = sadd.s32 %s153, %s154
          %s156 = smul.addr %s155, 4
          %s157 = scalar_lea.vmem %s0, %s156
        $region28: #{tpu_custom_call.1} parent=23 // pred_fallthru
          _
      $region24: #{tpu_custom_call.1} parent=5 // pred_fallthru
        _
      %p158 = scmp.le.s32.totalorder 1, %s12
      %p159 = scmp.lt.s32.totalorder %s12, 3
      %p160 = pnand %p158, %p159
      %p161 = pneg %p160
      // Predicated region
      $region29: #{tpu_custom_call.1} parent=5 // pred_check
        _
      $region30: #{tpu_custom_call.1} parent=5 // pred_check_branch
        %163 = sbr.rel (%p160) target = $region32
      $region31: #{tpu_custom_call.1} parent=5 // pred_region
        %s164 = ssub.s32 %s12, 1
        %p165 = scmp.lt.s32.totalorder %s21, 1
        %s166 = scalar_select %p165, %s21, 1
        %p167 = scmp.lt.s32.totalorder %s22, 0
        %s168 = scalar_select %p167, %s22, 0
        %s169 = smul.addr %s166, 2
        %s170 = sadd.s32 %s168, %s169
        %s171 = smul.addr %s170, 4
        %s172 = scalar_lea.vmem %s0, %s171
        %p173 = pneg %p52
        %p174 = pneg %p49
        %p175 = pneg %p73
        %p176 = pneg %p70
        %p177 = pneg %p94
        %p178 = pneg %p91
        %p179 = pneg %p122
        %p180 = pneg %p119
        %s181 = sand.u32 %s109, 1
        %s182 = scalar_lea.sflag [#allocation3], %s181
        %s183 = sand.u32 %s109, 1
        %s184 = smul.addr %s183, 8
        %s185 = scalar_lea.vmem [#allocation2], %s184
        %p186 = scmp.lt.s32.totalorder %s21, 1
        %s187 = scalar_select %p186, %s21, 1
        %p188 = scmp.lt.s32.totalorder %s22, 0
        %s189 = scalar_select %p188, %s22, 0
        %s190 = smul.addr %s187, 2
        %s191 = sadd.s32 %s189, %s190
        %s192 = smul.addr %s191, 4
        %s193 = scalar_lea.vmem %s0, %s192
        %v195 = vld [vmem:[%s193] sm:$0xf]
        %v196 = vld [vmem:[%s193 + $0x4] sm:$0xf]
        %v197 = vunpack.c.l.bf16 %v195
        %v198 = vunpack.c.l.bf16 %v196
        %v199 = vld [vmem:[%s1] sm:$0xff]
        %v200 = vld [vmem:[%s1 + $0x8] sm:$0xff]
        %202 = vset.pattern.permute.xlu0 0
        %203 = vperm.xlu0 %202, %v199
        %v204 = vpop.permute.xlu0 %203
        %207 = vset.pattern.permute.xlu0 0
        %208 = vperm.xlu0 %207, %v200
        %v209 = vpop.permute.xlu0 %208
        %v211 = vmul.f32 %v197, %v204
        %v212 = vmul.f32 %v198, %v209
        %213 = vset.pattern.permute.xlu0 1
        %214 = vperm.xlu0 %213, %v199
        %v215 = vpop.permute.xlu0 %214
        %217 = vset.pattern.permute.xlu0 1
        %218 = vperm.xlu0 %217, %v200
        %v219 = vpop.permute.xlu0 %218
        %v221 = vadd.f32 %v211, %v215
        %v222 = vadd.f32 %v212, %v219
        %223 = vset.pattern.permute.xlu0 2
        %224 = vperm.xlu0 %223, %v199
        %v225 = vpop.permute.xlu0 %224
        %227 = vset.pattern.permute.xlu0 2
        %228 = vperm.xlu0 %227, %v200
        %v229 = vpop.permute.xlu0 %228
        %v231 = vmul.f32 %v197, %v225
        %v232 = vmul.f32 %v198, %v229
        %233 = vset.pattern.permute.xlu0 3
        %234 = vperm.xlu0 %233, %v199
        %v235 = vpop.permute.xlu0 %234
        %237 = vset.pattern.permute.xlu0 3
        %238 = vperm.xlu0 %237, %v200
        %v239 = vpop.permute.xlu0 %238
        %v241 = vadd.f32 %v231, %v235
        %v242 = vadd.f32 %v232, %v239
        %v243 = vand.u32 2147483647, %v241
        %v244 = vand.u32 2147483647, %v242
        %v245 = vmul.f32 %v243, 0.3275911
        %v246 = vmul.f32 %v244, 0.3275911
        %v247 = vadd.f32 %v245, 1.0
        %v248 = vadd.f32 %v246, 1.0
        %v249 = vrcp.pop %v247
        %v250 = vmul.f32 1.0, %v249
        %v251 = vrcp.pop %v248
        %v252 = vmul.f32 1.0, %v251
        %v253 = vmul.f32 %v250, 1.0614054
        %v254 = vmul.f32 %v252, 1.0614054
        %v255 = vadd.f32 %v253, -1.4531521
        %v256 = vadd.f32 %v254, -1.4531521
        %v257 = vmul.f32 %v250, %v255
        %v258 = vmul.f32 %v252, %v256
        %v259 = vadd.f32 %v257, 1.4214138
        %v260 = vadd.f32 %v258, 1.4214138
        %v261 = vmul.f32 %v250, %v259
        %v262 = vmul.f32 %v252, %v260
        %v263 = vadd.f32 %v261, -0.28449672
        %v264 = vadd.f32 %v262, -0.28449672
        %v265 = vmul.f32 %v250, %v263
        %v266 = vmul.f32 %v252, %v264
        %v267 = vadd.f32 %v265, 0.2548296
        %v268 = vadd.f32 %v266, 0.2548296
        %v269 = vmul.f32 %v250, %v267
        %v270 = vmul.f32 %v252, %v268
        %v271 = vsub.f32 0.0, %v243
        %v272 = vsub.f32 0.0, %v244
        %v273 = vmul.f32 %v271, %v243
        %v274 = vmul.f32 %v272, %v244
        %v275 = vmul.f32 %v273, 1.442695
        %v276 = vpow.pop %v275
        %v277 = vmul.f32 %v274, 1.442695
        %v278 = vpow.pop %v277
        %v279 = vmul.f32 %v269, %v276
        %v280 = vmul.f32 %v270, %v278
        %v281 = vsub.f32 1.0, %v279
        %v282 = vsub.f32 1.0, %v280
        %vm283 = vcmp.lt.f32.partialorder %v241, 0.0
        %vm284 = vcmp.lt.f32.partialorder %v242, 0.0
        %v285 = vsub.f32 0.0, %v281
        %v286 = vsub.f32 0.0, %v282
        %v287 = vsel %vm283, %v285, %v281
        %v288 = vsel %vm284, %v286, %v282
        %v289 = vmul.f32 %v221, %v287
        %v290 = vmul.f32 %v222, %v288
        %v291 = vadd.f32 %v221, %v289
        %v292 = vadd.f32 %v222, %v290
        %v293 = vld [vmem:[%s2] sm:$0xf]
        %v294 = vpack.c.bf16 %v292, %v291
        %vm295 = vcmask 130048
        %v297 = vsel %vm295, %v293, 0
        %299 = vmatprep.subr.bf16.mxu0 0
        %300 = vmatpush1.bf16.msra.mxu0 %v294
        %301 = vmatprep.subr.bf16.mxu0 0
        %302 = vmatpush1.bf16.msra.mxu0 0
        %303 = vmatprep.subr.bf16.mxu0 0
        %304 = vmatpush1.bf16.msra.mxu0 0
        %305 = vmatprep.subr.bf16.mxu0 0
        %306 = vmatpush1.bf16.msra.mxu0 0
        %307 = vmatprep.subr.bf16.mxu0 0
        %308 = vmatpush1.bf16.msra.mxu0 0
        %309 = vmatprep.subr.bf16.mxu0 0
        %310 = vmatpush1.bf16.msra.mxu0 0
        %311 = vmatprep.subr.bf16.mxu0 0
        %312 = vmatpush1.bf16.msra.mxu0 0
        %313 = vmatprep.subr.bf16.mxu0 0
        %314 = vmatpush1.bf16.msra.mxu0 0
        %315 = vmatprep.subr.bf16.mxu0 0
        %316 = vmatpush1.bf16.msra.mxu0 0
        %317 = vmatprep.subr.bf16.mxu0 0
        %318 = vmatpush1.bf16.msra.mxu0 0
        %319 = vmatprep.subr.bf16.mxu0 0
        %320 = vmatpush1.bf16.msra.mxu0 0
        %321 = vmatprep.subr.bf16.mxu0 0
        %322 = vmatpush1.bf16.msra.mxu0 0
        %323 = vmatprep.subr.bf16.mxu0 0
        %324 = vmatpush1.bf16.msra.mxu0 0
        %325 = vmatprep.subr.bf16.mxu0 0
        %326 = vmatpush1.bf16.msra.mxu0 0
        %327 = vmatprep.subr.bf16.mxu0 0
        %328 = vmatpush1.bf16.msra.mxu0 0
        %329 = vmatprep.subr.bf16.mxu0 0
        %330 = vmatpush1.bf16.msra.mxu0 0
        %331 = vmatprep.mubr.bf16.mxu0 0
        %332 = vmatmul.mubr.bf16.gmra.mrb[0].mxu0 %v297
        %v333 = vpop.f32.mrb[0].mxu0
        %v334 = vadd.f32 0.0, %v333
        %v335 = vpop.f32.mrb[0].mxu0
        %v336 = vpop.f32.mrb[0].mxu0
        %v337 = vpop.f32.mrb[0].mxu0
        %338 = vdwg.mxu0
        %vm339 = vcmask 523264
        %340 = vst.msk [vmem:[%s185] sm:$0xff] %vm339, %v334
        %s341 = sand.u32 %s109, 1
        %s342 = scalar_lea.sflag [#allocation3], %s341
        %s343 = sand.u32 %s109, 1
        %s344 = smul.addr %s343, 8
        %s345 = scalar_lea.vmem [#allocation2], %s344
        // Predicated region
        $region33: #{tpu_custom_call.1} parent=31 // pred_check
          %p346 = pneg %p119
        $region34: #{tpu_custom_call.1} parent=31 // pred_check_branch
          %348 = sbr.rel (%p346) target = $region36
        $region35: #{tpu_custom_call.1} parent=31 // pred_region
          %s350 = ssub.s32 128, 128
          %351 = vsyncadd %s342, %s350
          %s352 = sadd.s32 %s22, %s21
          %s353 = smul.addr %s352, 128
          %s354 = scalar_lea.hbm %s3, %s353
          %s356 = sshll.u32 %s345, 4
          %s357 = int_to_ptr.vmem [resolvable:$true] %s356
          %359 = dma.vmem_to_hbm [thread:$0]  %s357, 128, %s354, %s342
        $region36: #{tpu_custom_call.1} parent=31 // pred_fallthru
          _
      $region32: #{tpu_custom_call.1} parent=5 // pred_fallthru
        _
      %p360 = scmp.le.s32.totalorder 2, %s12
      // Predicated region
      $region37: #{tpu_custom_call.1} parent=5 // pred_check
        %p361 = pneg %p360
      $region38: #{tpu_custom_call.1} parent=5 // pred_check_branch
        %363 = sbr.rel (%p361) target = $region40
      $region39: #{tpu_custom_call.1} parent=5 // pred_region
        %s364 = ssub.s32 %s12, 2
        // Predicated region
        $region41: #{tpu_custom_call.1} parent=39 // pred_check
          %p365 = pneg %p125
        $region42: #{tpu_custom_call.1} parent=39 // pred_check_branch
          %367 = sbr.rel (%p365) target = $region44
        $region43: #{tpu_custom_call.1} parent=39 // pred_region
          %s368 = sand.u32 %s110, 1
          %s369 = scalar_lea.sflag [#allocation3], %s368
          %s370 = sand.u32 %s110, 1
          %s371 = smul.addr %s370, 8
          %s372 = scalar_lea.vmem [#allocation2], %s371
          %373 = dma.done %s369, 128
        $region44: #{tpu_custom_call.1} parent=39 // pred_fallthru
          _
      $region40: #{tpu_custom_call.1} parent=5 // pred_fallthru
        _
    $region6: #{tpu_custom_call.1} parent=1 // loop_footer
      %s16 = sadd.s32 1, %s12
    $region7: #{tpu_custom_call.1} parent=1 // loop_footer_branch
      %11 = sbr.rel target = $region3
    $region8: #{tpu_custom_call.1} parent=1 // loop_exit
      _
    %374 = vsyncpa [#allocation3], 1
    %s375 = scalar_lea.sflag [#allocation3], 1
    %376 = vsyncpa %s375, 1

</llo_original>
